<compile_context>
chip_gen: v7x
topology: tpu7x:2x2x1
jax: 0.10.0
libtpu: 0.0.40
codegen_flags: <defaults>
</compile_context>

<pallas_src>
import functools

import jax
import jax.numpy as jnp
from jax.experimental import pallas as pl
from jax.experimental.pallas import tpu as pltpu


# ---------------------------------------------------------------------------
# Kernel
# ---------------------------------------------------------------------------
def _deepset_kernel(
    x_ref,
    e1w, e1b, e2w, e2b, e3w, e3b, e4w, e4b,
    d1w, d1b, d2w, d2b, d3w, d3b, d4w, d4b,
    out_ref,
    acc_ref,
    *,
    inv_set_size,
):
    """Grid = (batch_tiles, set_tiles); the set axis is the pooled reduction."""
    s_idx = pl.program_id(1)

    @pl.when(s_idx == 0)
    def _init():
        acc_ref[...] = jnp.zeros_like(acc_ref)

    def linear(a, w_ref, b_ref, relu):
        # bf16 MXU operands, f32 accumulation; bias add (+ ReLU) in f32 on the VPU.
        y = jnp.dot(a.astype(jnp.bfloat16), w_ref[...],
                    preferred_element_type=jnp.float32) + b_ref[...]
        if relu:
            # Keep hidden activations in bf16: halves live activation VMEM and
            # vld/vst traffic between layers; the next matmul consumes bf16 anyway.
            return jnp.maximum(y, 0.0).astype(jnp.bfloat16)
        return y

    tb, ts, din = x_ref.shape
    x = x_ref[...].reshape(tb * ts, din)            # rows of this (batch, set) tile

    # ----- encoder: Linear/ReLU x3 -> Linear (f32 out, pre-pooling) -----
    h = linear(x, e1w, e1b, True)
    h = linear(h, e2w, e2b, True)
    h = linear(h, e3w, e3b, True)
    h = linear(h, e4w, e4b, False)

    # Partial mean-pool: per-set-element sum of this tile's rows (XLU reduce).
    acc_ref[...] += jnp.sum(h.reshape(tb, ts, -1), axis=1)

    # ----- decoder: once per batch tile, on the last set step -----
    @pl.when(s_idx == pl.num_programs(1) - 1)
    def _decode():
        pooled = acc_ref[...] * inv_set_size        # mean over the set axis (f32)
        d = linear(pooled, d1w, d1b, True)
        d = linear(d, d2w, d2b, True)
        d = linear(d, d3w, d3b, True)
        d = linear(d, d4w, d4b, False)              # final proj, padded to 128 lanes
        out_ref[...] = d.astype(out_ref.dtype)      # lane-dense (tb, H_pad) store


# ---------------------------------------------------------------------------
# Wrapper helpers
# ---------------------------------------------------------------------------
def _round_up(n, m):
    return ((n + m - 1) // m) * m


def _pick_tile(n, max_tile, align):
    """Largest divisor of n that is <= max_tile, preferring multiples of `align`
    (then of 8, to satisfy the (8,128) block constraint).  Returns n if
    n <= max_tile; falls back to n (full extent is always a legal block)."""
    if n <= max_tile:
        return n
    best8 = 0
    for t in range(min(max_tile, n), 0, -1):
        if n % t:
            continue
        if t % align == 0:
            return t
        if best8 == 0 and t % 8 == 0:
            best8 = t
    return best8 if best8 else n


def _vmem_limit_bytes():
    """Per-generation scoped-VMEM budget: ~3/4 of physical VMEM, capped at 96 MiB.
    -> ~96 MiB on v5e/v6e (128 MiB physical), ~48 MiB on v7x (64 MiB/TC)."""
    cap = 64 * 1024 * 1024
    try:
        info = pltpu.get_tpu_info()
        cap = int(getattr(info, "vmem_capacity_bytes", cap) or cap)
    except Exception:
        pass
    return max(32 * 1024 * 1024, min(96 * 1024 * 1024, (cap * 3) // 4))


def prepare_deepset_params(params, num_outputs, dim_output):
    """One-time parameter prep (hoisted out of the forward): bf16 weight casts,
    f32 biases, and zero-padding of the final projection to a 128-lane multiple
    so the kernel's output store is an unmasked, lane-dense vst."""
    (e1w, e1b, e2w, e2b, e3w, e3b, e4w, e4b,
     d1w, d1b, d2w, d2b, d3w, d3b, d4w, d4b) = params
    H = e1w.shape[1]
    H_out = num_outputs * dim_output
    H_pad = _round_up(H_out, 128)
    d4w_p = jnp.zeros((H, H_pad), d4w.dtype).at[:, :H_out].set(d4w)
    d4b_p = jnp.zeros((1, H_pad), d4b.dtype).at[:, :H_out].set(d4b)
    weights = [e1w, e2w, e3w, e4w, d1w, d2w, d3w, d4w_p]
    biases = [e1b, e2b, e3b, e4b, d1b, d2b, d3b, d4b_p]
    kparams = []
    for w, b in zip(weights, biases):
        kparams += [w.astype(jnp.bfloat16), b.astype(jnp.float32)]
    return tuple(kparams)


# ---------------------------------------------------------------------------
# Forward
# ---------------------------------------------------------------------------
@functools.partial(jax.jit, static_argnames=("num_outputs", "dim_output"))
def deepset_forward(x, kparams, *, num_outputs, dim_output):
    B, S, Din = x.shape
    H = kparams[0].shape[1]           # e1w: (Din, H)
    H_pad = kparams[14].shape[1]      # padded d4w: (H, H_pad)
    H_out = num_outputs * dim_output

    xb = x.astype(jnp.bfloat16)
    vmem_limit = _vmem_limit_bytes()

    # ---- VMEM-budgeted row target (weights single-buffered, activations live) ----
    weight_bytes = sum(a.size * a.dtype.itemsize for a in kparams)
    # Per encoder row: 2x bf16 x tile (double buffer) + its reshape copy
    # + ~3 live bf16 hidden slabs + f32 e4 slab + its reshape copy; 2x safety factor.
    per_row = 2 * (3 * Din * 2 + 3 * H * 2 + 2 * H * 4)
    avail = vmem_limit - weight_bytes - (6 << 20)          # compiler-scratch headroom
    row_target = int(max(256, min(2048, avail // max(per_row, 1))))

    # ---- tiling: set tile first (bf16 sublane aligned), then batch tile ----
    min_tb = B if B < 8 else 8
    ts = _pick_tile(S, min(S, max(16, row_target // min_tb)), align=16)
    tb_cap = max(min_tb, row_target // ts)
    tb_cap = min(tb_cap, max(min_tb, B // 2))              # >=2 batch steps on v7x
    tb = _pick_tile(B, tb_cap, align=8)
    grid = (B // tb, S // ts)

    x_spec = pl.BlockSpec((tb, ts, Din), lambda b, s: (b, s, 0))
    # Constant weights/biases: whole-array resident in VMEM, single copy — no
    # per-step DMA, no double-buffering (previous version wasted 2x their size).
    w_spec = pl.BlockSpec(memory_space=pltpu.MemorySpace.VMEM)
    in_specs = [x_spec] + [w_spec] * len(kparams)
    out_spec = pl.BlockSpec((tb, H_pad), lambda b, s: (b, 0))

    flops = 2 * B * S * (Din * H + 3 * H * H) + 2 * B * (3 * H * H + H * H_pad)
    bytes_accessed = (xb.size * xb.dtype.itemsize + weight_bytes + B * H_pad * 4)
    cost = pl.CostEstimate(flops=flops, transcendentals=0,
                           bytes_accessed=bytes_accessed)

    out = pl.pallas_call(
        functools.partial(_deepset_kernel, inv_set_size=float(1.0 / S)),
        out_shape=jax.ShapeDtypeStruct((B, H_pad), jnp.float32),
        grid_spec=pltpu.PrefetchScalarGridSpec(
            num_scalar_prefetch=0,
            grid=grid,
            in_specs=in_specs,
            out_specs=out_spec,
            scratch_shapes=[pltpu.VMEM((tb, H), jnp.float32)],  # pooled-sum accumulator
        ),
        compiler_params=pltpu.CompilerParams(
            dimension_semantics=("parallel", "arbitrary"),
            vmem_limit_bytes=vmem_limit,
        ),
        cost_estimate=cost,
    )(xb, *kparams)

    return out[:, :H_out].reshape(-1, num_outputs, dim_output)


# ---------------------------------------------------------------------------
# Params + pure-JAX reference (PyTorch semantics)
# ---------------------------------------------------------------------------
def init_deepset_params(key, dim_input, num_outputs, dim_output, dim_hidden):
    sizes = [
        (dim_input, dim_hidden), (dim_hidden, dim_hidden),
        (dim_hidden, dim_hidden), (dim_hidden, dim_hidden),                 # encoder
        (dim_hidden, dim_hidden), (dim_hidden, dim_hidden),
        (dim_hidden, dim_hidden), (dim_hidden, num_outputs * dim_output),   # decoder
    ]
    params = []
    for i, (fin, fout) in enumerate(sizes):
        kw, kb = jax.random.split(jax.random.fold_in(key, i))
        w = jax.random.normal(kw, (fin, fout), jnp.float32) * 0.02
        b = jax.random.normal(kb, (1, fout), jnp.float32) * 0.01
        params += [w, b]
    return params


def deepset_ref(x, params, num_outputs, dim_output):
    (e1w, e1b, e2w, e2b, e3w, e3b, e4w, e4b,
     d1w, d1b, d2w, d2b, d3w, d3b, d4w, d4b) = params
    h = jnp.maximum(x @ e1w + e1b, 0.0)
    h = jnp.maximum(h @ e2w + e2b, 0.0)
    h = jnp.maximum(h @ e3w + e3b, 0.0)
    h = h @ e4w + e4b
    h = h.mean(-2)
    d = jnp.maximum(h @ d1w + d1b, 0.0)
    d = jnp.maximum(d @ d2w + d2b, 0.0)
    d = jnp.maximum(d @ d3w + d3b, 0.0)
    d = d @ d4w + d4b
    return d.reshape(-1, num_outputs, dim_output)


if __name__ == "__main__":
    # Small shapes consistent with the module's forward: (batch, set_size, dim_input)
    B, S = 2, 8
    dim_input, dim_hidden = 32, 128
    num_outputs, dim_output = 4, 8

    key = jax.random.PRNGKey(0)
    kx, kp = jax.random.split(key)
    x = jax.random.normal(kx, (B, S, dim_input), jnp.float32)
    params = init_deepset_params(kp, dim_input, num_outputs, dim_output, dim_hidden)

    # One-time parameter prep (bf16 casts + lane padding) hoisted out of the forward.
    kparams = prepare_deepset_params(params, num_outputs, dim_output)
    kparams = jax.block_until_ready(kparams)

    out = deepset_forward(x, kparams, num_outputs=num_outputs, dim_output=dim_output)
    out = jax.block_until_ready(out)

    ref = deepset_ref(x, params, num_outputs, dim_output)
    assert out.shape == (B, num_outputs, dim_output), out.shape
    # bf16 matmul operands -> looser tolerance than pure-f32.
    assert jnp.allclose(out, ref, atol=2e-3, rtol=2e-2), "mismatch vs reference"

    print("KERNEL_OK")
</pallas_src>

<mosaic_0001>
module attributes {stable_mosaic.version = 11 : i64} {
  func.func @_deepset_kernel(%arg0: i32, %arg1: i32, %arg2: memref<2x8x32xbf16, #tpu.memory_space<vmem>>, %arg3: memref<32x128xbf16, #tpu.memory_space<vmem>>, %arg4: memref<1x128xf32, #tpu.memory_space<vmem>>, %arg5: memref<128x128xbf16, #tpu.memory_space<vmem>>, %arg6: memref<1x128xf32, #tpu.memory_space<vmem>>, %arg7: memref<128x128xbf16, #tpu.memory_space<vmem>>, %arg8: memref<1x128xf32, #tpu.memory_space<vmem>>, %arg9: memref<128x128xbf16, #tpu.memory_space<vmem>>, %arg10: memref<1x128xf32, #tpu.memory_space<vmem>>, %arg11: memref<128x128xbf16, #tpu.memory_space<vmem>>, %arg12: memref<1x128xf32, #tpu.memory_space<vmem>>, %arg13: memref<128x128xbf16, #tpu.memory_space<vmem>>, %arg14: memref<1x128xf32, #tpu.memory_space<vmem>>, %arg15: memref<128x128xbf16, #tpu.memory_space<vmem>>, %arg16: memref<1x128xf32, #tpu.memory_space<vmem>>, %arg17: memref<128x128xbf16, #tpu.memory_space<vmem>>, %arg18: memref<1x128xf32, #tpu.memory_space<vmem>>, %arg19: memref<2x128xf32, #tpu.memory_space<vmem>>, %arg20: memref<2x128xf32, #tpu.memory_space<vmem>>) attributes {dimension_semantics = [#tpu.dimension_semantics<parallel>, #tpu.dimension_semantics<arbitrary>], iteration_bounds = array<i64: 1, 1>, scalar_prefetch = 0 : i64, scratch_operands = 1 : i64, tpu.core_type = #tpu.core_type<tc>, window_params = [{transform_indices = @transform_0, window_bounds = array<i64: 2, 8, 32>}, {pipeline_mode = #tpu.pipeline_mode<synchronous>, transform_indices = @transform_1, window_bounds = array<i64: 32, 128>}, {pipeline_mode = #tpu.pipeline_mode<synchronous>, transform_indices = @transform_2, window_bounds = array<i64: 1, 128>}, {pipeline_mode = #tpu.pipeline_mode<synchronous>, transform_indices = @transform_3, window_bounds = array<i64: 128, 128>}, {pipeline_mode = #tpu.pipeline_mode<synchronous>, transform_indices = @transform_4, window_bounds = array<i64: 1, 128>}, {pipeline_mode = #tpu.pipeline_mode<synchronous>, transform_indices = @transform_5, window_bounds = array<i64: 128, 128>}, {pipeline_mode = #tpu.pipeline_mode<synchronous>, transform_indices = @transform_6, window_bounds = array<i64: 1, 128>}, {pipeline_mode = #tpu.pipeline_mode<synchronous>, transform_indices = @transform_7, window_bounds = array<i64: 128, 128>}, {pipeline_mode = #tpu.pipeline_mode<synchronous>, transform_indices = @transform_8, window_bounds = array<i64: 1, 128>}, {pipeline_mode = #tpu.pipeline_mode<synchronous>, transform_indices = @transform_9, window_bounds = array<i64: 128, 128>}, {pipeline_mode = #tpu.pipeline_mode<synchronous>, transform_indices = @transform_10, window_bounds = array<i64: 1, 128>}, {pipeline_mode = #tpu.pipeline_mode<synchronous>, transform_indices = @transform_11, window_bounds = array<i64: 128, 128>}, {pipeline_mode = #tpu.pipeline_mode<synchronous>, transform_indices = @transform_12, window_bounds = array<i64: 1, 128>}, {pipeline_mode = #tpu.pipeline_mode<synchronous>, transform_indices = @transform_13, window_bounds = array<i64: 128, 128>}, {pipeline_mode = #tpu.pipeline_mode<synchronous>, transform_indices = @transform_14, window_bounds = array<i64: 1, 128>}, {pipeline_mode = #tpu.pipeline_mode<synchronous>, transform_indices = @transform_15, window_bounds = array<i64: 128, 128>}, {pipeline_mode = #tpu.pipeline_mode<synchronous>, transform_indices = @transform_16, window_bounds = array<i64: 1, 128>}, {transform_indices = @transform_17, window_bounds = array<i64: 2, 128>}]} {
    %c0_i32 = arith.constant 0 : i32
    %0 = arith.cmpi eq, %arg1, %c0_i32 : i32
    %1 = arith.extui %0 : i1 to i32
    %c0_i32_0 = arith.constant 0 : i32
    %2 = arith.cmpi ne, %1, %c0_i32_0 : i32
    scf.if %2 {
      %cst_32 = arith.constant 0.000000e+00 : f32
      %42 = vector.broadcast %cst_32 : f32 to vector<2x128xf32>
      %c0_33 = arith.constant 0 : index
      %c0_34 = arith.constant 0 : index
      %43 = vector.load %arg20[%c0_33, %c0_34] : memref<2x128xf32, #tpu.memory_space<vmem>>, vector<2x128xf32>
      tpu.vector_store %arg20[%c0_33, %c0_34], %42 {strides = array<i32>} : memref<2x128xf32, #tpu.memory_space<vmem>>, vector<2x128xf32>,
    } else {
    }
    %c0 = arith.constant 0 : index
    %c0_1 = arith.constant 0 : index
    %c0_2 = arith.constant 0 : index
    %3 = vector.load %arg2[%c0, %c0_1, %c0_2] : memref<2x8x32xbf16, #tpu.memory_space<vmem>>, vector<2x8x32xbf16>
    %4 = vector.shape_cast %3 : vector<2x8x32xbf16> to vector<16x32xbf16>
    %c0_3 = arith.constant 0 : index
    %c0_4 = arith.constant 0 : index
    %5 = vector.load %arg3[%c0_3, %c0_4] : memref<32x128xbf16, #tpu.memory_space<vmem>>, vector<32x128xbf16>
    %cst = arith.constant dense<0.000000e+00> : vector<16x128xf32>
    %6 = tpu.matmul %4, %5, %cst {dimension_numbers = #tpu.dot_dimension_numbers<[1], [0], [0], [1], [0, 0, 1, 1], [], []>} : vector<16x32xbf16>, vector<32x128xbf16>, vector<16x128xf32> -> vector<16x128xf32>
    %c0_5 = arith.constant 0 : index
    %c0_6 = arith.constant 0 : index
    %7 = vector.load %arg4[%c0_5, %c0_6] : memref<1x128xf32, #tpu.memory_space<vmem>>, vector<1x128xf32>
    %8 = vector.broadcast %7 : vector<1x128xf32> to vector<16x128xf32>
    %9 = arith.addf %6, %8 : vector<16x128xf32>
    %cst_7 = arith.constant 0.000000e+00 : f32
    %10 = vector.broadcast %cst_7 : f32 to vector<16x128xf32>
    %11 = arith.maximumf %9, %10 : vector<16x128xf32>
    %12 = arith.truncf %11 : vector<16x128xf32> to vector<16x128xbf16>
    %c0_8 = arith.constant 0 : index
    %c0_9 = arith.constant 0 : index
    %13 = vector.load %arg5[%c0_8, %c0_9] : memref<128x128xbf16, #tpu.memory_space<vmem>>, vector<128x128xbf16>
    %cst_10 = arith.constant dense<0.000000e+00> : vector<16x128xf32>
    %14 = tpu.matmul %12, %13, %cst_10 {dimension_numbers = #tpu.dot_dimension_numbers<[1], [0], [0], [1], [0, 0, 1, 1], [], []>} : vector<16x128xbf16>, vector<128x128xbf16>, vector<16x128xf32> -> vector<16x128xf32>
    %c0_11 = arith.constant 0 : index
    %c0_12 = arith.constant 0 : index
    %15 = vector.load %arg6[%c0_11, %c0_12] : memref<1x128xf32, #tpu.memory_space<vmem>>, vector<1x128xf32>
    %16 = vector.broadcast %15 : vector<1x128xf32> to vector<16x128xf32>
    %17 = arith.addf %14, %16 : vector<16x128xf32>
    %cst_13 = arith.constant 0.000000e+00 : f32
    %18 = vector.broadcast %cst_13 : f32 to vector<16x128xf32>
    %19 = arith.maximumf %17, %18 : vector<16x128xf32>
    %20 = arith.truncf %19 : vector<16x128xf32> to vector<16x128xbf16>
    %c0_14 = arith.constant 0 : index
    %c0_15 = arith.constant 0 : index
    %21 = vector.load %arg7[%c0_14, %c0_15] : memref<128x128xbf16, #tpu.memory_space<vmem>>, vector<128x128xbf16>
    %cst_16 = arith.constant dense<0.000000e+00> : vector<16x128xf32>
    %22 = tpu.matmul %20, %21, %cst_16 {dimension_numbers = #tpu.dot_dimension_numbers<[1], [0], [0], [1], [0, 0, 1, 1], [], []>} : vector<16x128xbf16>, vector<128x128xbf16>, vector<16x128xf32> -> vector<16x128xf32>
    %c0_17 = arith.constant 0 : index
    %c0_18 = arith.constant 0 : index
    %23 = vector.load %arg8[%c0_17, %c0_18] : memref<1x128xf32, #tpu.memory_space<vmem>>, vector<1x128xf32>
    %24 = vector.broadcast %23 : vector<1x128xf32> to vector<16x128xf32>
    %25 = arith.addf %22, %24 : vector<16x128xf32>
    %cst_19 = arith.constant 0.000000e+00 : f32
    %26 = vector.broadcast %cst_19 : f32 to vector<16x128xf32>
    %27 = arith.maximumf %25, %26 : vector<16x128xf32>
    %28 = arith.truncf %27 : vector<16x128xf32> to vector<16x128xbf16>
    %c0_20 = arith.constant 0 : index
    %c0_21 = arith.constant 0 : index
    %29 = vector.load %arg9[%c0_20, %c0_21] : memref<128x128xbf16, #tpu.memory_space<vmem>>, vector<128x128xbf16>
    %cst_22 = arith.constant dense<0.000000e+00> : vector<16x128xf32>
    %30 = tpu.matmul %28, %29, %cst_22 {dimension_numbers = #tpu.dot_dimension_numbers<[1], [0], [0], [1], [0, 0, 1, 1], [], []>} : vector<16x128xbf16>, vector<128x128xbf16>, vector<16x128xf32> -> vector<16x128xf32>
    %c0_23 = arith.constant 0 : index
    %c0_24 = arith.constant 0 : index
    %31 = vector.load %arg10[%c0_23, %c0_24] : memref<1x128xf32, #tpu.memory_space<vmem>>, vector<1x128xf32>
    %32 = vector.broadcast %31 : vector<1x128xf32> to vector<16x128xf32>
    %33 = arith.addf %30, %32 : vector<16x128xf32>
    %c0_25 = arith.constant 0 : index
    %c0_26 = arith.constant 0 : index
    %34 = vector.load %arg20[%c0_25, %c0_26] : memref<2x128xf32, #tpu.memory_space<vmem>>, vector<2x128xf32>
    %35 = vector.shape_cast %33 : vector<16x128xf32> to vector<2x8x128xf32>
    %cst_27 = arith.constant dense<0.000000e+00> : vector<2x128xf32>
    %36 = vector.multi_reduction <add>, %35, %cst_27 [1] : vector<2x8x128xf32> to vector<2x128xf32>
    %37 = arith.addf %34, %36 : vector<2x128xf32>
    %c0_28 = arith.constant 0 : index
    %c0_29 = arith.constant 0 : index
    %38 = vector.load %arg20[%c0_28, %c0_29] : memref<2x128xf32, #tpu.memory_space<vmem>>, vector<2x128xf32>
    tpu.vector_store %arg20[%c0_28, %c0_29], %37 {strides = array<i32>} : memref<2x128xf32, #tpu.memory_space<vmem>>, vector<2x128xf32>,
    %c0_i32_30 = arith.constant 0 : i32
    %39 = arith.cmpi eq, %arg1, %c0_i32_30 : i32
    %40 = arith.extui %39 : i1 to i32
    %c0_i32_31 = arith.constant 0 : i32
    %41 = arith.cmpi ne, %40, %c0_i32_31 : i32
    scf.if %41 {
      %c0_32 = arith.constant 0 : index
      %c0_33 = arith.constant 0 : index
      %42 = vector.load %arg20[%c0_32, %c0_33] : memref<2x128xf32, #tpu.memory_space<vmem>>, vector<2x128xf32>
      %cst_34 = arith.constant 1.250000e-01 : f32
      %43 = vector.broadcast %cst_34 : f32 to vector<2x128xf32>
      %44 = arith.mulf %42, %43 : vector<2x128xf32>
      %45 = arith.truncf %44 : vector<2x128xf32> to vector<2x128xbf16>
      %c0_35 = arith.constant 0 : index
      %c0_36 = arith.constant 0 : index
      %46 = vector.load %arg11[%c0_35, %c0_36] : memref<128x128xbf16, #tpu.memory_space<vmem>>, vector<128x128xbf16>
      %cst_37 = arith.constant dense<0.000000e+00> : vector<2x128xf32>
      %47 = tpu.matmul %45, %46, %cst_37 {dimension_numbers = #tpu.dot_dimension_numbers<[1], [0], [0], [1], [0, 0, 1, 1], [], []>} : vector<2x128xbf16>, vector<128x128xbf16>, vector<2x128xf32> -> vector<2x128xf32>
      %c0_38 = arith.constant 0 : index
      %c0_39 = arith.constant 0 : index
      %48 = vector.load %arg12[%c0_38, %c0_39] : memref<1x128xf32, #tpu.memory_space<vmem>>, vector<1x128xf32>
      %49 = vector.broadcast %48 : vector<1x128xf32> to vector<2x128xf32>
      %50 = arith.addf %47, %49 : vector<2x128xf32>
      %cst_40 = arith.constant 0.000000e+00 : f32
      %51 = vector.broadcast %cst_40 : f32 to vector<2x128xf32>
      %52 = arith.maximumf %50, %51 : vector<2x128xf32>
      %53 = arith.truncf %52 : vector<2x128xf32> to vector<2x128xbf16>
      %c0_41 = arith.constant 0 : index
      %c0_42 = arith.constant 0 : index
      %54 = vector.load %arg13[%c0_41, %c0_42] : memref<128x128xbf16, #tpu.memory_space<vmem>>, vector<128x128xbf16>
      %cst_43 = arith.constant dense<0.000000e+00> : vector<2x128xf32>
      %55 = tpu.matmul %53, %54, %cst_43 {dimension_numbers = #tpu.dot_dimension_numbers<[1], [0], [0], [1], [0, 0, 1, 1], [], []>} : vector<2x128xbf16>, vector<128x128xbf16>, vector<2x128xf32> -> vector<2x128xf32>
      %c0_44 = arith.constant 0 : index
      %c0_45 = arith.constant 0 : index
      %56 = vector.load %arg14[%c0_44, %c0_45] : memref<1x128xf32, #tpu.memory_space<vmem>>, vector<1x128xf32>
      %57 = vector.broadcast %56 : vector<1x128xf32> to vector<2x128xf32>
      %58 = arith.addf %55, %57 : vector<2x128xf32>
      %cst_46 = arith.constant 0.000000e+00 : f32
      %59 = vector.broadcast %cst_46 : f32 to vector<2x128xf32>
      %60 = arith.maximumf %58, %59 : vector<2x128xf32>
      %61 = arith.truncf %60 : vector<2x128xf32> to vector<2x128xbf16>
      %c0_47 = arith.constant 0 : index
      %c0_48 = arith.constant 0 : index
      %62 = vector.load %arg15[%c0_47, %c0_48] : memref<128x128xbf16, #tpu.memory_space<vmem>>, vector<128x128xbf16>
      %cst_49 = arith.constant dense<0.000000e+00> : vector<2x128xf32>
      %63 = tpu.matmul %61, %62, %cst_49 {dimension_numbers = #tpu.dot_dimension_numbers<[1], [0], [0], [1], [0, 0, 1, 1], [], []>} : vector<2x128xbf16>, vector<128x128xbf16>, vector<2x128xf32> -> vector<2x128xf32>
      %c0_50 = arith.constant 0 : index
      %c0_51 = arith.constant 0 : index
      %64 = vector.load %arg16[%c0_50, %c0_51] : memref<1x128xf32, #tpu.memory_space<vmem>>, vector<1x128xf32>
      %65 = vector.broadcast %64 : vector<1x128xf32> to vector<2x128xf32>
      %66 = arith.addf %63, %65 : vector<2x128xf32>
      %cst_52 = arith.constant 0.000000e+00 : f32
      %67 = vector.broadcast %cst_52 : f32 to vector<2x128xf32>
      %68 = arith.maximumf %66, %67 : vector<2x128xf32>
      %69 = arith.truncf %68 : vector<2x128xf32> to vector<2x128xbf16>
      %c0_53 = arith.constant 0 : index
      %c0_54 = arith.constant 0 : index
      %70 = vector.load %arg17[%c0_53, %c0_54] : memref<128x128xbf16, #tpu.memory_space<vmem>>, vector<128x128xbf16>
      %cst_55 = arith.constant dense<0.000000e+00> : vector<2x128xf32>
      %71 = tpu.matmul %69, %70, %cst_55 {dimension_numbers = #tpu.dot_dimension_numbers<[1], [0], [0], [1], [0, 0, 1, 1], [], []>} : vector<2x128xbf16>, vector<128x128xbf16>, vector<2x128xf32> -> vector<2x128xf32>
      %c0_56 = arith.constant 0 : index
      %c0_57 = arith.constant 0 : index
      %72 = vector.load %arg18[%c0_56, %c0_57] : memref<1x128xf32, #tpu.memory_space<vmem>>, vector<1x128xf32>
      %73 = vector.broadcast %72 : vector<1x128xf32> to vector<2x128xf32>
      %74 = arith.addf %71, %73 : vector<2x128xf32>
      %c0_58 = arith.constant 0 : index
      %c0_59 = arith.constant 0 : index
      %75 = vector.load %arg19[%c0_58, %c0_59] : memref<2x128xf32, #tpu.memory_space<vmem>>, vector<2x128xf32>
      tpu.vector_store %arg19[%c0_58, %c0_59], %74 {strides = array<i32>} : memref<2x128xf32, #tpu.memory_space<vmem>>, vector<2x128xf32>,
    } else {
    }
    return
  }
  func.func @transform_0(%arg0: i32, %arg1: i32) -> (i32, i32, i32) {
    %c0_i32 = arith.constant 0 : i32
    %c0_i32_0 = arith.constant 0 : i32
    return %arg0, %arg1, %c0_i32 : i32, i32, i32
  }
  func.func @transform_1(%arg0: i32, %arg1: i32) -> (i32, i32) {
    %c0_i32 = arith.constant 0 : i32
    %c0_i32_0 = arith.constant 0 : i32
    %c0_i32_1 = arith.constant 0 : i32
    return %c0_i32, %c0_i32_0 : i32, i32
  }
  func.func @transform_2(%arg0: i32, %arg1: i32) -> (i32, i32) {
    %c0_i32 = arith.constant 0 : i32
    %c0_i32_0 = arith.constant 0 : i32
    %c0_i32_1 = arith.constant 0 : i32
    return %c0_i32, %c0_i32_0 : i32, i32
  }
  func.func @transform_3(%arg0: i32, %arg1: i32) -> (i32, i32) {
    %c0_i32 = arith.constant 0 : i32
    %c0_i32_0 = arith.constant 0 : i32
    %c0_i32_1 = arith.constant 0 : i32
    return %c0_i32, %c0_i32_0 : i32, i32
  }
  func.func @transform_4(%arg0: i32, %arg1: i32) -> (i32, i32) {
    %c0_i32 = arith.constant 0 : i32
    %c0_i32_0 = arith.constant 0 : i32
    %c0_i32_1 = arith.constant 0 : i32
    return %c0_i32, %c0_i32_0 : i32, i32
  }
  func.func @transform_5(%arg0: i32, %arg1: i32) -> (i32, i32) {
    %c0_i32 = arith.constant 0 : i32
    %c0_i32_0 = arith.constant 0 : i32
    %c0_i32_1 = arith.constant 0 : i32
    return %c0_i32, %c0_i32_0 : i32, i32
  }
  func.func @transform_6(%arg0: i32, %arg1: i32) -> (i32, i32) {
    %c0_i32 = arith.constant 0 : i32
    %c0_i32_0 = arith.constant 0 : i32
    %c0_i32_1 = arith.constant 0 : i32
    return %c0_i32, %c0_i32_0 : i32, i32
  }
  func.func @transform_7(%arg0: i32, %arg1: i32) -> (i32, i32) {
    %c0_i32 = arith.constant 0 : i32
    %c0_i32_0 = arith.constant 0 : i32
    %c0_i32_1 = arith.constant 0 : i32
    return %c0_i32, %c0_i32_0 : i32, i32
  }
  func.func @transform_8(%arg0: i32, %arg1: i32) -> (i32, i32) {
    %c0_i32 = arith.constant 0 : i32
    %c0_i32_0 = arith.constant 0 : i32
    %c0_i32_1 = arith.constant 0 : i32
    return %c0_i32, %c0_i32_0 : i32, i32
  }
  func.func @transform_9(%arg0: i32, %arg1: i32) -> (i32, i32) {
    %c0_i32 = arith.constant 0 : i32
    %c0_i32_0 = arith.constant 0 : i32
    %c0_i32_1 = arith.constant 0 : i32
    return %c0_i32, %c0_i32_0 : i32, i32
  }
  func.func @transform_10(%arg0: i32, %arg1: i32) -> (i32, i32) {
    %c0_i32 = arith.constant 0 : i32
    %c0_i32_0 = arith.constant 0 : i32
    %c0_i32_1 = arith.constant 0 : i32
    return %c0_i32, %c0_i32_0 : i32, i32
  }
  func.func @transform_11(%arg0: i32, %arg1: i32) -> (i32, i32) {
    %c0_i32 = arith.constant 0 : i32
    %c0_i32_0 = arith.constant 0 : i32
    %c0_i32_1 = arith.constant 0 : i32
    return %c0_i32, %c0_i32_0 : i32, i32
  }
  func.func @transform_12(%arg0: i32, %arg1: i32) -> (i32, i32) {
    %c0_i32 = arith.constant 0 : i32
    %c0_i32_0 = arith.constant 0 : i32
    %c0_i32_1 = arith.constant 0 : i32
    return %c0_i32, %c0_i32_0 : i32, i32
  }
  func.func @transform_13(%arg0: i32, %arg1: i32) -> (i32, i32) {
    %c0_i32 = arith.constant 0 : i32
    %c0_i32_0 = arith.constant 0 : i32
    %c0_i32_1 = arith.constant 0 : i32
    return %c0_i32, %c0_i32_0 : i32, i32
  }
  func.func @transform_14(%arg0: i32, %arg1: i32) -> (i32, i32) {
    %c0_i32 = arith.constant 0 : i32
    %c0_i32_0 = arith.constant 0 : i32
    %c0_i32_1 = arith.constant 0 : i32
    return %c0_i32, %c0_i32_0 : i32, i32
  }
  func.func @transform_15(%arg0: i32, %arg1: i32) -> (i32, i32) {
    %c0_i32 = arith.constant 0 : i32
    %c0_i32_0 = arith.constant 0 : i32
    %c0_i32_1 = arith.constant 0 : i32
    return %c0_i32, %c0_i32_0 : i32, i32
  }
  func.func @transform_16(%arg0: i32, %arg1: i32) -> (i32, i32) {
    %c0_i32 = arith.constant 0 : i32
    %c0_i32_0 = arith.constant 0 : i32
    %c0_i32_1 = arith.constant 0 : i32
    return %c0_i32, %c0_i32_0 : i32, i32
  }
  func.func @transform_17(%arg0: i32, %arg1: i32) -> (i32, i32) {
    %c0_i32 = arith.constant 0 : i32
    %c0_i32_0 = arith.constant 0 : i32
    return %arg0, %c0_i32 : i32, i32
  }
}

</mosaic_0001>

<llo_original>
// kernel: deepset_forward.1
$region0: #{deepset_forward.1}
  #allocation0 [shape = 'u32[]', space=smem, size = 0x4, offset = 0x4, fixed_abs, tag = 'smem constant byte address 0x4 - core index']
  #allocation1 [shape = 'u32[144,128]{1,0:T(1,128)}', space=vmem, size = 0x12000, scoped, tag = 'internal scratch']
  #allocation2 [shape = 'f32[2,128]{1,0:T(2,128)}', space=vmem, size = 0x400, scoped, tag = 'scratch operand']
  %s0 = inlined_call_operand.vmem [shape: bf16[2,8,32], index: 0, kind: input, shape index: {}]
  %s1 = inlined_call_operand.hbm [shape: bf16[32,128], index: 1, kind: input, shape index: {}]
  %s2 = inlined_call_operand.vmem [shape: f32[1,128], index: 2, kind: input, shape index: {}]
  %s3 = inlined_call_operand.hbm [shape: bf16[128,128], index: 3, kind: input, shape index: {}]
  %s4 = inlined_call_operand.hbm [shape: f32[1,128], index: 4, kind: input, shape index: {}]
  %s5 = inlined_call_operand.hbm [shape: bf16[128,128], index: 5, kind: input, shape index: {}]
  %s6 = inlined_call_operand.hbm [shape: f32[1,128], index: 6, kind: input, shape index: {}]
  %s7 = inlined_call_operand.hbm [shape: bf16[128,128], index: 7, kind: input, shape index: {}]
  %s8 = inlined_call_operand.hbm [shape: f32[1,128], index: 8, kind: input, shape index: {}]
  %s9 = inlined_call_operand.hbm [shape: bf16[128,128], index: 9, kind: input, shape index: {}]
  %s10 = inlined_call_operand.hbm [shape: f32[1,128], index: 10, kind: input, shape index: {}]
  %s11 = inlined_call_operand.vmem [shape: bf16[128,128], index: 11, kind: input, shape index: {}]
  %s12 = inlined_call_operand.vmem [shape: f32[1,128], index: 12, kind: input, shape index: {}]
  %s13 = inlined_call_operand.hbm [shape: bf16[128,128], index: 13, kind: input, shape index: {}]
  %s14 = inlined_call_operand.vmem [shape: f32[1,128], index: 14, kind: input, shape index: {}]
  %s15 = inlined_call_operand.hbm [shape: bf16[128,128], index: 15, kind: input, shape index: {}]
  %s16 = inlined_call_operand.vmem [shape: f32[1,128], index: 16, kind: input, shape index: {}]
  %s17 = inlined_call_operand.vmem [shape: f32[2,128], index: 17, kind: output, shape index: {}]
  %s18 = sld [smem:[#allocation0]]
  $region130: #{deepset_forward.1} parent=0
    _
  %s20 = ssub.s32 1, %s18
  %s21 = scalar_select 0, %s20, %s18
  $region1: #{deepset_forward.1} parent=0
    #allocation3 [shape = 'u8[8192]{0}', space=vmem, size = 0x2000, scoped, tag = 'input window, operand 1, single buffered']
    #allocation4 [shape = 's32[1]{0}', space=sflag, size = 0x4, scoped, tag = 'scoped memory for deepset_forward.1']
    #allocation5 [shape = 'u8[32768]{0}', space=vmem, size = 0x8000, scoped, tag = 'input window, operand 3, single buffered']
    #allocation6 [shape = 's32[1]{0}', space=sflag, size = 0x4, scoped, tag = 'scoped memory for deepset_forward.1']
    #allocation7 [shape = 'u8[512]{0}', space=vmem, size = 0x400, scoped, tag = 'input window, operand 4, single buffered']
    #allocation8 [shape = 'u8[32768]{0}', space=vmem, size = 0x8000, scoped, tag = 'input window, operand 5, single buffered']
    #allocation9 [shape = 's32[1]{0}', space=sflag, size = 0x4, scoped, tag = 'scoped memory for deepset_forward.1']
    #allocation10 [shape = 'u8[512]{0}', space=vmem, size = 0x400, scoped, tag = 'input window, operand 6, single buffered']
    #allocation11 [shape = 'u8[32768]{0}', space=vmem, size = 0x8000, scoped, tag = 'input window, operand 7, single buffered']
    #allocation12 [shape = 's32[1]{0}', space=sflag, size = 0x4, scoped, tag = 'scoped memory for deepset_forward.1']
    #allocation13 [shape = 'u8[512]{0}', space=vmem, size = 0x400, scoped, tag = 'input window, operand 8, single buffered']
    #allocation14 [shape = 'u8[32768]{0}', space=vmem, size = 0x8000, scoped, tag = 'input window, operand 9, single buffered']
    #allocation15 [shape = 's32[1]{0}', space=sflag, size = 0x4, scoped, tag = 'scoped memory for deepset_forward.1']
    #allocation16 [shape = 'u8[512]{0}', space=vmem, size = 0x400, scoped, tag = 'input window, operand 10, single buffered']
    #allocation17 [shape = 'u8[32768]{0}', space=vmem, size = 0x8000, scoped, tag = 'input window, operand 13, single buffered']
    #allocation18 [shape = 's32[1]{0}', space=sflag, size = 0x4, scoped, tag = 'scoped memory for deepset_forward.1']
    #allocation19 [shape = 'u8[32768]{0}', space=vmem, size = 0x8000, scoped, tag = 'input window, operand 15, single buffered']
    %22 = vsyncpa [#allocation4], 0
    %23 = vsyncpa [#allocation6], 0
    %24 = vsyncpa [#allocation9], 0
    %25 = vsyncpa [#allocation12], 0
    %26 = vsyncpa [#allocation15], 0
    %27 = vsyncpa [#allocation18], 0
    // Predicated region
    $region2: #{deepset_forward.1} parent=1 // pred_check
      _
    $region3: #{deepset_forward.1} parent=1 // pred_check_branch
      %29 = sbr.rel (0) target = $region5
    $region4: #{deepset_forward.1} parent=1 // pred_region
      _
    $region5: #{deepset_forward.1} parent=1 // pred_fallthru
      _
    // Predicated region
    $region6: #{deepset_forward.1} parent=1 // pred_check
      _
    $region7: #{deepset_forward.1} parent=1 // pred_check_branch
      %31 = sbr.rel (0) target = $region9
    $region8: #{deepset_forward.1} parent=1 // pred_region
      %s33 = ssub.s32 256, 256
      %34 = vsyncadd [#allocation4], %s33
      %s35 = sshll.u32 [#allocation3], 4
      %s36 = int_to_ptr.vmem [resolvable:$true] %s35
      %41 = dma.hbm_to_vmem [thread:$0]  %s1, 256, %s36, [#allocation4], 64, 64, 4
    $region9: #{deepset_forward.1} parent=1 // pred_fallthru
      _
    // Predicated region
    $region10: #{deepset_forward.1} parent=1 // pred_check
      _
    $region11: #{deepset_forward.1} parent=1 // pred_check_branch
      %43 = sbr.rel (0) target = $region13
    $region12: #{deepset_forward.1} parent=1 // pred_region
      _
    $region13: #{deepset_forward.1} parent=1 // pred_fallthru
      _
    // Predicated region
    $region14: #{deepset_forward.1} parent=1 // pred_check
      _
    $region15: #{deepset_forward.1} parent=1 // pred_check_branch
      %45 = sbr.rel (0) target = $region17
    $region16: #{deepset_forward.1} parent=1 // pred_region
      %s47 = ssub.s32 1024, 1024
      %48 = vsyncadd [#allocation6], %s47
      %s49 = sshll.u32 [#allocation5], 4
      %s50 = int_to_ptr.vmem [resolvable:$true] %s49
      %55 = dma.hbm_to_vmem [thread:$0]  %s3, 1024, %s50, [#allocation6], 64, 64, 4
    $region17: #{deepset_forward.1} parent=1 // pred_fallthru
      _
    // Predicated region
    $region18: #{deepset_forward.1} parent=1 // pred_check
      _
    $region19: #{deepset_forward.1} parent=1 // pred_check_branch
      %57 = sbr.rel (0) target = $region21
    $region20: #{deepset_forward.1} parent=1 // pred_region
      %s59 = ssub.s32 16, 16
      %60 = vsyncadd [#allocation6], %s59
      %s62 = sshll.u32 [#allocation7], 4
      %s63 = int_to_ptr.vmem [resolvable:$true] %s62
      %65 = dma.hbm_to_vmem [thread:$0]  %s4, 16, %s63, [#allocation6]
    $region21: #{deepset_forward.1} parent=1 // pred_fallthru
      _
    // Predicated region
    $region22: #{deepset_forward.1} parent=1 // pred_check
      _
    $region23: #{deepset_forward.1} parent=1 // pred_check_branch
      %67 = sbr.rel (0) target = $region25
    $region24: #{deepset_forward.1} parent=1 // pred_region
      %s69 = ssub.s32 1024, 1024
      %70 = vsyncadd [#allocation9], %s69
      %s71 = sshll.u32 [#allocation8], 4
      %s72 = int_to_ptr.vmem [resolvable:$true] %s71
      %77 = dma.hbm_to_vmem [thread:$0]  %s5, 1024, %s72, [#allocation9], 64, 64, 4
    $region25: #{deepset_forward.1} parent=1 // pred_fallthru
      _
    // Predicated region
    $region26: #{deepset_forward.1} parent=1 // pred_check
      _
    $region27: #{deepset_forward.1} parent=1 // pred_check_branch
      %79 = sbr.rel (0) target = $region29
    $region28: #{deepset_forward.1} parent=1 // pred_region
      %s81 = ssub.s32 16, 16
      %82 = vsyncadd [#allocation9], %s81
      %s84 = sshll.u32 [#allocation10], 4
      %s85 = int_to_ptr.vmem [resolvable:$true] %s84
      %87 = dma.hbm_to_vmem [thread:$0]  %s6, 16, %s85, [#allocation9]
    $region29: #{deepset_forward.1} parent=1 // pred_fallthru
      _
    // Predicated region
    $region30: #{deepset_forward.1} parent=1 // pred_check
      _
    $region31: #{deepset_forward.1} parent=1 // pred_check_branch
      %89 = sbr.rel (0) target = $region33
    $region32: #{deepset_forward.1} parent=1 // pred_region
      %s91 = ssub.s32 1024, 1024
      %92 = vsyncadd [#allocation12], %s91
      %s93 = sshll.u32 [#allocation11], 4
      %s94 = int_to_ptr.vmem [resolvable:$true] %s93
      %99 = dma.hbm_to_vmem [thread:$0]  %s7, 1024, %s94, [#allocation12], 64, 64, 4
    $region33: #{deepset_forward.1} parent=1 // pred_fallthru
      _
    // Predicated region
    $region34: #{deepset_forward.1} parent=1 // pred_check
      _
    $region35: #{deepset_forward.1} parent=1 // pred_check_branch
      %101 = sbr.rel (0) target = $region37
    $region36: #{deepset_forward.1} parent=1 // pred_region
      %s103 = ssub.s32 16, 16
      %104 = vsyncadd [#allocation12], %s103
      %s106 = sshll.u32 [#allocation13], 4
      %s107 = int_to_ptr.vmem [resolvable:$true] %s106
      %109 = dma.hbm_to_vmem [thread:$0]  %s8, 16, %s107, [#allocation12]
    $region37: #{deepset_forward.1} parent=1 // pred_fallthru
      _
    // Predicated region
    $region38: #{deepset_forward.1} parent=1 // pred_check
      _
    $region39: #{deepset_forward.1} parent=1 // pred_check_branch
      %111 = sbr.rel (0) target = $region41
    $region40: #{deepset_forward.1} parent=1 // pred_region
      %s113 = ssub.s32 1024, 1024
      %114 = vsyncadd [#allocation15], %s113
      %s115 = sshll.u32 [#allocation14], 4
      %s116 = int_to_ptr.vmem [resolvable:$true] %s115
      %121 = dma.hbm_to_vmem [thread:$0]  %s9, 1024, %s116, [#allocation15], 64, 64, 4
    $region41: #{deepset_forward.1} parent=1 // pred_fallthru
      _
    // Predicated region
    $region42: #{deepset_forward.1} parent=1 // pred_check
      _
    $region43: #{deepset_forward.1} parent=1 // pred_check_branch
      %123 = sbr.rel (0) target = $region45
    $region44: #{deepset_forward.1} parent=1 // pred_region
      %s125 = ssub.s32 16, 16
      %126 = vsyncadd [#allocation15], %s125
      %s128 = sshll.u32 [#allocation16], 4
      %s129 = int_to_ptr.vmem [resolvable:$true] %s128
      %131 = dma.hbm_to_vmem [thread:$0]  %s10, 16, %s129, [#allocation15]
    $region45: #{deepset_forward.1} parent=1 // pred_fallthru
      _
    // Predicated region
    $region46: #{deepset_forward.1} parent=1 // pred_check
      _
    $region47: #{deepset_forward.1} parent=1 // pred_check_branch
      %133 = sbr.rel (0) target = $region49
    $region48: #{deepset_forward.1} parent=1 // pred_region
      _
    $region49: #{deepset_forward.1} parent=1 // pred_fallthru
      _
    // Predicated region
    $region50: #{deepset_forward.1} parent=1 // pred_check
      _
    $region51: #{deepset_forward.1} parent=1 // pred_check_branch
      %135 = sbr.rel (0) target = $region53
    $region52: #{deepset_forward.1} parent=1 // pred_region
      _
    $region53: #{deepset_forward.1} parent=1 // pred_fallthru
      _
    // Predicated region
    $region54: #{deepset_forward.1} parent=1 // pred_check
      _
    $region55: #{deepset_forward.1} parent=1 // pred_check_branch
      %137 = sbr.rel (0) target = $region57
    $region56: #{deepset_forward.1} parent=1 // pred_region
      %s139 = ssub.s32 1024, 1024
      %140 = vsyncadd [#allocation18], %s139
      %s141 = sshll.u32 [#allocation17], 4
      %s142 = int_to_ptr.vmem [resolvable:$true] %s141
      %147 = dma.hbm_to_vmem [thread:$0]  %s13, 1024, %s142, [#allocation18], 64, 64, 4
    $region57: #{deepset_forward.1} parent=1 // pred_fallthru
      _
    // Predicated region
    $region58: #{deepset_forward.1} parent=1 // pred_check
      _
    $region59: #{deepset_forward.1} parent=1 // pred_check_branch
      %149 = sbr.rel (0) target = $region61
    $region60: #{deepset_forward.1} parent=1 // pred_region
      _
    $region61: #{deepset_forward.1} parent=1 // pred_fallthru
      _
    // Predicated region
    $region62: #{deepset_forward.1} parent=1 // pred_check
      _
    $region63: #{deepset_forward.1} parent=1 // pred_check_branch
      %151 = sbr.rel (0) target = $region65
    $region64: #{deepset_forward.1} parent=1 // pred_region
      %s153 = ssub.s32 1024, 1024
      %154 = vsyncadd [#allocation18], %s153
      %s155 = sshll.u32 [#allocation19], 4
      %s156 = int_to_ptr.vmem [resolvable:$true] %s155
      %161 = dma.hbm_to_vmem [thread:$0]  %s15, 1024, %s156, [#allocation18], 64, 64, 4
    $region65: #{deepset_forward.1} parent=1 // pred_fallthru
      _
    // Predicated region
    $region66: #{deepset_forward.1} parent=1 // pred_check
      _
    $region67: #{deepset_forward.1} parent=1 // pred_check_branch
      %163 = sbr.rel (0) target = $region69
    $region68: #{deepset_forward.1} parent=1 // pred_region
      _
    $region69: #{deepset_forward.1} parent=1 // pred_fallthru
      _
    // Predicated region
    $region70: #{deepset_forward.1} parent=1 // pred_check
      _
    $region71: #{deepset_forward.1} parent=1 // pred_check_branch
      %165 = sbr.rel (0) target = $region73
    $region72: #{deepset_forward.1} parent=1 // pred_region
      %166 = dma.done [#allocation4], 256
    $region73: #{deepset_forward.1} parent=1 // pred_fallthru
      _
    // Predicated region
    $region74: #{deepset_forward.1} parent=1 // pred_check
      _
    $region75: #{deepset_forward.1} parent=1 // pred_check_branch
      %168 = sbr.rel (0) target = $region77
    $region76: #{deepset_forward.1} parent=1 // pred_region
      %169 = dma.done [#allocation6], 1024
    $region77: #{deepset_forward.1} parent=1 // pred_fallthru
      _
    // Predicated region
    $region78: #{deepset_forward.1} parent=1 // pred_check
      _
    $region79: #{deepset_forward.1} parent=1 // pred_check_branch
      %171 = sbr.rel (0) target = $region81
    $region80: #{deepset_forward.1} parent=1 // pred_region
      %172 = dma.done [#allocation6], 16
    $region81: #{deepset_forward.1} parent=1 // pred_fallthru
      _
    // Predicated region
    $region82: #{deepset_forward.1} parent=1 // pred_check
      _
    $region83: #{deepset_forward.1} parent=1 // pred_check_branch
      %174 = sbr.rel (0) target = $region85
    $region84: #{deepset_forward.1} parent=1 // pred_region
      %175 = dma.done [#allocation9], 1024
    $region85: #{deepset_forward.1} parent=1 // pred_fallthru
      _
    // Predicated region
    $region86: #{deepset_forward.1} parent=1 // pred_check
      _
    $region87: #{deepset_forward.1} parent=1 // pred_check_branch
      %177 = sbr.rel (0) target = $region89
    $region88: #{deepset_forward.1} parent=1 // pred_region
      %178 = dma.done [#allocation9], 16
    $region89: #{deepset_forward.1} parent=1 // pred_fallthru
      _
    // Predicated region
    $region90: #{deepset_forward.1} parent=1 // pred_check
      _
    $region91: #{deepset_forward.1} parent=1 // pred_check_branch
      %180 = sbr.rel (0) target = $region93
    $region92: #{deepset_forward.1} parent=1 // pred_region
      %181 = dma.done [#allocation12], 1024
    $region93: #{deepset_forward.1} parent=1 // pred_fallthru
      _
    // Predicated region
    $region94: #{deepset_forward.1} parent=1 // pred_check
      _
    $region95: #{deepset_forward.1} parent=1 // pred_check_branch
      %183 = sbr.rel (0) target = $region97
    $region96: #{deepset_forward.1} parent=1 // pred_region
      %184 = dma.done [#allocation12], 16
    $region97: #{deepset_forward.1} parent=1 // pred_fallthru
      _
    // Predicated region
    $region98: #{deepset_forward.1} parent=1 // pred_check
      _
    $region99: #{deepset_forward.1} parent=1 // pred_check_branch
      %186 = sbr.rel (0) target = $region101
    $region100: #{deepset_forward.1} parent=1 // pred_region
      %187 = dma.done [#allocation15], 1024
    $region101: #{deepset_forward.1} parent=1 // pred_fallthru
      _
    // Predicated region
    $region102: #{deepset_forward.1} parent=1 // pred_check
      _
    $region103: #{deepset_forward.1} parent=1 // pred_check_branch
      %189 = sbr.rel (0) target = $region105
    $region104: #{deepset_forward.1} parent=1 // pred_region
      %190 = dma.done [#allocation15], 16
    $region105: #{deepset_forward.1} parent=1 // pred_fallthru
      _
    // Predicated region
    $region106: #{deepset_forward.1} parent=1 // pred_check
      _
    $region107: #{deepset_forward.1} parent=1 // pred_check_branch
      %192 = sbr.rel (0) target = $region109
    $region108: #{deepset_forward.1} parent=1 // pred_region
      %193 = dma.done [#allocation18], 1024
    $region109: #{deepset_forward.1} parent=1 // pred_fallthru
      _
    // Predicated region
    $region110: #{deepset_forward.1} parent=1 // pred_check
      _
    $region111: #{deepset_forward.1} parent=1 // pred_check_branch
      %195 = sbr.rel (0) target = $region113
    $region112: #{deepset_forward.1} parent=1 // pred_region
      %196 = dma.done [#allocation18], 1024
    $region113: #{deepset_forward.1} parent=1 // pred_fallthru
      _
    %p198 = scmp.eq.s32.totalorder 0, 0
    // Predicated region
    $region114: #{deepset_forward.1} parent=1 // pred_check
      %p199 = pneg %p198
    $region115: #{deepset_forward.1} parent=1 // pred_check_branch
      %201 = sbr.rel (%p199) target = $region117
    $region116: #{deepset_forward.1} parent=1 // pred_region
      %202 = vst [vmem:[#allocation2] sm:$0x3] 0.0
    $region117: #{deepset_forward.1} parent=1 // pred_fallthru
      _
    %v203 = vld [vmem:[%s0] sm:$0xf]
    %v204 = vld [vmem:[%s0 + $0x4] sm:$0xf]
    %v205 = vld [vmem:[#allocation3] sm:$0xf]
    %v206 = vld [vmem:[#allocation3 + $0x4] sm:$0xf]
    %v207 = vld [vmem:[#allocation3 + $0x8] sm:$0xf]
    %v208 = vld [vmem:[#allocation3 + $0xc] sm:$0xf]
    %v209 = vld [vmem:[%s2] sm:$0x1]
    %v211 = vlaneseq
    %v212 = vshrl.u32 %v211, 7
    %v213 = vsub.s32 0, %v212
    %v214 = vrot.slane %v209, %v213
    %v218 = vunpack.c.l.b16 %v203
    %v219 = vunpack.c.l.b16 %v204
    %v220 = vpack.c.b16 %v219, %v218
    %v225 = vunpack.c.l.b16 %v205
    %v226 = vunpack.c.l.b16 %v206
    %v227 = vunpack.c.l.b16 %v207
    %v228 = vunpack.c.l.b16 %v208
    %v229 = vpack.c.b16 %v226, %v225
    %v230 = vpack.c.b16 %v228, %v227
    %vm233 = vcmask 261120
    %v235 = vsel %vm233, %v220, 0
    %237 = vmatprep.subr.bf16.mxu0 0
    %238 = vmatpush1.bf16.msra.mxu0 %v229
    %239 = vmatprep.subr.bf16.mxu0 0
    %240 = vmatpush1.bf16.msra.mxu0 %v230
    %241 = vmatprep.subr.bf16.mxu0 0
    %242 = vmatpush1.bf16.msra.mxu0 0
    %243 = vmatprep.subr.bf16.mxu0 0
    %244 = vmatpush1.bf16.msra.mxu0 0
    %245 = vmatprep.subr.bf16.mxu0 0
    %246 = vmatpush1.bf16.msra.mxu0 0
    %247 = vmatprep.subr.bf16.mxu0 0
    %248 = vmatpush1.bf16.msra.mxu0 0
    %249 = vmatprep.subr.bf16.mxu0 0
    %250 = vmatpush1.bf16.msra.mxu0 0
    %251 = vmatprep.subr.bf16.mxu0 0
    %252 = vmatpush1.bf16.msra.mxu0 0
    %253 = vmatprep.subr.bf16.mxu0 0
    %254 = vmatpush1.bf16.msra.mxu0 0
    %255 = vmatprep.subr.bf16.mxu0 0
    %256 = vmatpush1.bf16.msra.mxu0 0
    %257 = vmatprep.subr.bf16.mxu0 0
    %258 = vmatpush1.bf16.msra.mxu0 0
    %259 = vmatprep.subr.bf16.mxu0 0
    %260 = vmatpush1.bf16.msra.mxu0 0
    %261 = vmatprep.subr.bf16.mxu0 0
    %262 = vmatpush1.bf16.msra.mxu0 0
    %263 = vmatprep.subr.bf16.mxu0 0
    %264 = vmatpush1.bf16.msra.mxu0 0
    %265 = vmatprep.subr.bf16.mxu0 0
    %266 = vmatpush1.bf16.msra.mxu0 0
    %267 = vmatprep.subr.bf16.mxu0 0
    %268 = vmatpush1.bf16.msra.mxu0 0
    %269 = vmatprep.mubr.bf16.mxu0 0
    %270 = vmatmul.mubr.bf16.gmra.mrb[0].mxu0 %v235
    %v271 = vpop.f32.mrb[0].mxu0
    %v272 = vadd.f32 %v214, %v271
    %v273 = vpop.f32.mrb[0].mxu0
    %v274 = vpop.f32.mrb[0].mxu0
    %v275 = vadd.f32 %v214, %v274
    %v276 = vpop.f32.mrb[0].mxu0
    %277 = vdwg.mxu0
    %v278 = vmax.f32 %v272, 0.0
    %v279 = vmax.f32 %v275, 0.0
    %v280 = vpack.c.bf16 %v279, %v278
    %v281 = vld [vmem:[#allocation5] sm:$0xf]
    %v282 = vld [vmem:[#allocation5 + $0x4] sm:$0xf]
    %v283 = vld [vmem:[#allocation5 + $0x8] sm:$0xf]
    %v284 = vld [vmem:[#allocation5 + $0xc] sm:$0xf]
    %v285 = vld [vmem:[#allocation5 + $0x10] sm:$0xf]
    %v286 = vld [vmem:[#allocation5 + $0x14] sm:$0xf]
    %v287 = vld [vmem:[#allocation5 + $0x18] sm:$0xf]
    %v288 = vld [vmem:[#allocation5 + $0x1c] sm:$0xf]
    %v289 = vld [vmem:[#allocation5 + $0x20] sm:$0xf]
    %v290 = vld [vmem:[#allocation5 + $0x24] sm:$0xf]
    %v291 = vld [vmem:[#allocation5 + $0x28] sm:$0xf]
    %v292 = vld [vmem:[#allocation5 + $0x2c] sm:$0xf]
    %v293 = vld [vmem:[#allocation5 + $0x30] sm:$0xf]
    %v294 = vld [vmem:[#allocation5 + $0x34] sm:$0xf]
    %v295 = vld [vmem:[#allocation5 + $0x38] sm:$0xf]
    %v296 = vld [vmem:[#allocation5 + $0x3c] sm:$0xf]
    %v297 = vld [vmem:[#allocation7] sm:$0x1]
    %v299 = vlaneseq
    %v300 = vshrl.u32 %v299, 7
    %v301 = vsub.s32 0, %v300
    %v302 = vrot.slane %v297, %v301
    %v320 = vunpack.c.l.b16 %v281
    %v321 = vunpack.c.l.b16 %v282
    %v322 = vunpack.c.l.b16 %v283
    %v323 = vunpack.c.l.b16 %v284
    %v324 = vunpack.c.l.b16 %v285
    %v325 = vunpack.c.l.b16 %v286
    %v326 = vunpack.c.l.b16 %v287
    %v327 = vunpack.c.l.b16 %v288
    %v328 = vunpack.c.l.b16 %v289
    %v329 = vunpack.c.l.b16 %v290
    %v330 = vunpack.c.l.b16 %v291
    %v331 = vunpack.c.l.b16 %v292
    %v332 = vunpack.c.l.b16 %v293
    %v333 = vunpack.c.l.b16 %v294
    %v334 = vunpack.c.l.b16 %v295
    %v335 = vunpack.c.l.b16 %v296
    %v336 = vpack.c.b16 %v321, %v320
    %v337 = vpack.c.b16 %v323, %v322
    %v338 = vpack.c.b16 %v325, %v324
    %v339 = vpack.c.b16 %v327, %v326
    %v340 = vpack.c.b16 %v329, %v328
    %v341 = vpack.c.b16 %v331, %v330
    %v342 = vpack.c.b16 %v333, %v332
    %v343 = vpack.c.b16 %v335, %v334
    %352 = vmatprep.subr.bf16.mxu0 0
    %353 = vmatpush1.bf16.msra.mxu0 %v336
    %354 = vmatprep.subr.bf16.mxu0 0
    %355 = vmatpush1.bf16.msra.mxu0 %v337
    %356 = vmatprep.subr.bf16.mxu0 0
    %357 = vmatpush1.bf16.msra.mxu0 %v338
    %358 = vmatprep.subr.bf16.mxu0 0
    %359 = vmatpush1.bf16.msra.mxu0 %v339
    %360 = vmatprep.subr.bf16.mxu0 0
    %361 = vmatpush1.bf16.msra.mxu0 %v340
    %362 = vmatprep.subr.bf16.mxu0 0
    %363 = vmatpush1.bf16.msra.mxu0 %v341
    %364 = vmatprep.subr.bf16.mxu0 0
    %365 = vmatpush1.bf16.msra.mxu0 %v342
    %366 = vmatprep.subr.bf16.mxu0 0
    %367 = vmatpush1.bf16.msra.mxu0 %v343
    %368 = vmatprep.subr.bf16.mxu0 0
    %369 = vmatpush1.bf16.msra.mxu0 0
    %370 = vmatprep.subr.bf16.mxu0 0
    %371 = vmatpush1.bf16.msra.mxu0 0
    %372 = vmatprep.subr.bf16.mxu0 0
    %373 = vmatpush1.bf16.msra.mxu0 0
    %374 = vmatprep.subr.bf16.mxu0 0
    %375 = vmatpush1.bf16.msra.mxu0 0
    %376 = vmatprep.subr.bf16.mxu0 0
    %377 = vmatpush1.bf16.msra.mxu0 0
    %378 = vmatprep.subr.bf16.mxu0 0
    %379 = vmatpush1.bf16.msra.mxu0 0
    %380 = vmatprep.subr.bf16.mxu0 0
    %381 = vmatpush1.bf16.msra.mxu0 0
    %382 = vmatprep.subr.bf16.mxu0 0
    %383 = vmatpush1.bf16.msra.mxu0 0
    %384 = vmatprep.mubr.bf16.mxu0 0
    %385 = vmatmul.mubr.bf16.gmra.mrb[0].mxu0 %v280
    %v386 = vpop.f32.mrb[0].mxu0
    %v387 = vadd.f32 %v302, %v386
    %v388 = vpop.f32.mrb[0].mxu0
    %v389 = vpop.f32.mrb[0].mxu0
    %v390 = vadd.f32 %v302, %v389
    %v391 = vpop.f32.mrb[0].mxu0
    %392 = vdwg.mxu0
    %v393 = vmax.f32 %v387, 0.0
    %v394 = vmax.f32 %v390, 0.0
    %v395 = vpack.c.bf16 %v394, %v393
    %v396 = vld [vmem:[#allocation8] sm:$0xf]
    %v397 = vld [vmem:[#allocation8 + $0x4] sm:$0xf]
    %v398 = vld [vmem:[#allocation8 + $0x8] sm:$0xf]
    %v399 = vld [vmem:[#allocation8 + $0xc] sm:$0xf]
    %v400 = vld [vmem:[#allocation8 + $0x10] sm:$0xf]
    %v401 = vld [vmem:[#allocation8 + $0x14] sm:$0xf]
    %v402 = vld [vmem:[#allocation8 + $0x18] sm:$0xf]
    %v403 = vld [vmem:[#allocation8 + $0x1c] sm:$0xf]
    %v404 = vld [vmem:[#allocation8 + $0x20] sm:$0xf]
    %v405 = vld [vmem:[#allocation8 + $0x24] sm:$0xf]
    %v406 = vld [vmem:[#allocation8 + $0x28] sm:$0xf]
    %v407 = vld [vmem:[#allocation8 + $0x2c] sm:$0xf]
    %v408 = vld [vmem:[#allocation8 + $0x30] sm:$0xf]
    %v409 = vld [vmem:[#allocation8 + $0x34] sm:$0xf]
    %v410 = vld [vmem:[#allocation8 + $0x38] sm:$0xf]
    %v411 = vld [vmem:[#allocation8 + $0x3c] sm:$0xf]
    %v412 = vld [vmem:[#allocation10] sm:$0x1]
    %v414 = vlaneseq
    %v415 = vshrl.u32 %v414, 7
    %v416 = vsub.s32 0, %v415
    %v417 = vrot.slane %v412, %v416
    %v435 = vunpack.c.l.b16 %v396
    %v436 = vunpack.c.l.b16 %v397
    %v437 = vunpack.c.l.b16 %v398
    %v438 = vunpack.c.l.b16 %v399
    %v439 = vunpack.c.l.b16 %v400
    %v440 = vunpack.c.l.b16 %v401
    %v441 = vunpack.c.l.b16 %v402
    %v442 = vunpack.c.l.b16 %v403
    %v443 = vunpack.c.l.b16 %v404
    %v444 = vunpack.c.l.b16 %v405
    %v445 = vunpack.c.l.b16 %v406
    %v446 = vunpack.c.l.b16 %v407
    %v447 = vunpack.c.l.b16 %v408
    %v448 = vunpack.c.l.b16 %v409
    %v449 = vunpack.c.l.b16 %v410
    %v450 = vunpack.c.l.b16 %v411
    %v451 = vpack.c.b16 %v436, %v435
    %v452 = vpack.c.b16 %v438, %v437
    %v453 = vpack.c.b16 %v440, %v439
    %v454 = vpack.c.b16 %v442, %v441
    %v455 = vpack.c.b16 %v444, %v443
    %v456 = vpack.c.b16 %v446, %v445
    %v457 = vpack.c.b16 %v448, %v447
    %v458 = vpack.c.b16 %v450, %v449
    %467 = vmatprep.subr.bf16.mxu0 0
    %468 = vmatpush1.bf16.msra.mxu0 %v451
    %469 = vmatprep.subr.bf16.mxu0 0
    %470 = vmatpush1.bf16.msra.mxu0 %v452
    %471 = vmatprep.subr.bf16.mxu0 0
    %472 = vmatpush1.bf16.msra.mxu0 %v453
    %473 = vmatprep.subr.bf16.mxu0 0
    %474 = vmatpush1.bf16.msra.mxu0 %v454
    %475 = vmatprep.subr.bf16.mxu0 0
    %476 = vmatpush1.bf16.msra.mxu0 %v455
    %477 = vmatprep.subr.bf16.mxu0 0
    %478 = vmatpush1.bf16.msra.mxu0 %v456
    %479 = vmatprep.subr.bf16.mxu0 0
    %480 = vmatpush1.bf16.msra.mxu0 %v457
    %481 = vmatprep.subr.bf16.mxu0 0
    %482 = vmatpush1.bf16.msra.mxu0 %v458
    %483 = vmatprep.subr.bf16.mxu0 0
    %484 = vmatpush1.bf16.msra.mxu0 0
    %485 = vmatprep.subr.bf16.mxu0 0
    %486 = vmatpush1.bf16.msra.mxu0 0
    %487 = vmatprep.subr.bf16.mxu0 0
    %488 = vmatpush1.bf16.msra.mxu0 0
    %489 = vmatprep.subr.bf16.mxu0 0
    %490 = vmatpush1.bf16.msra.mxu0 0
    %491 = vmatprep.subr.bf16.mxu0 0
    %492 = vmatpush1.bf16.msra.mxu0 0
    %493 = vmatprep.subr.bf16.mxu0 0
    %494 = vmatpush1.bf16.msra.mxu0 0
    %495 = vmatprep.subr.bf16.mxu0 0
    %496 = vmatpush1.bf16.msra.mxu0 0
    %497 = vmatprep.subr.bf16.mxu0 0
    %498 = vmatpush1.bf16.msra.mxu0 0
    %499 = vmatprep.mubr.bf16.mxu0 0
    %500 = vmatmul.mubr.bf16.gmra.mrb[0].mxu0 %v395
    %v501 = vpop.f32.mrb[0].mxu0
    %v502 = vadd.f32 %v417, %v501
    %v503 = vpop.f32.mrb[0].mxu0
    %v504 = vpop.f32.mrb[0].mxu0
    %v505 = vadd.f32 %v417, %v504
    %v506 = vpop.f32.mrb[0].mxu0
    %507 = vdwg.mxu0
    %v508 = vmax.f32 %v502, 0.0
    %v509 = vmax.f32 %v505, 0.0
    %v510 = vpack.c.bf16 %v509, %v508
    %v511 = vld [vmem:[#allocation11] sm:$0xf]
    %v512 = vld [vmem:[#allocation11 + $0x4] sm:$0xf]
    %v513 = vld [vmem:[#allocation11 + $0x8] sm:$0xf]
    %v514 = vld [vmem:[#allocation11 + $0xc] sm:$0xf]
    %v515 = vld [vmem:[#allocation11 + $0x10] sm:$0xf]
    %v516 = vld [vmem:[#allocation11 + $0x14] sm:$0xf]
    %v517 = vld [vmem:[#allocation11 + $0x18] sm:$0xf]
    %v518 = vld [vmem:[#allocation11 + $0x1c] sm:$0xf]
    %v519 = vld [vmem:[#allocation11 + $0x20] sm:$0xf]
    %v520 = vld [vmem:[#allocation11 + $0x24] sm:$0xf]
    %v521 = vld [vmem:[#allocation11 + $0x28] sm:$0xf]
    %v522 = vld [vmem:[#allocation11 + $0x2c] sm:$0xf]
    %v523 = vld [vmem:[#allocation11 + $0x30] sm:$0xf]
    %v524 = vld [vmem:[#allocation11 + $0x34] sm:$0xf]
    %v525 = vld [vmem:[#allocation11 + $0x38] sm:$0xf]
    %v526 = vld [vmem:[#allocation11 + $0x3c] sm:$0xf]
    %v527 = vld [vmem:[#allocation13] sm:$0x1]
    %v529 = vlaneseq
    %v530 = vshrl.u32 %v529, 7
    %v531 = vsub.s32 0, %v530
    %v532 = vrot.slane %v527, %v531
    %v550 = vunpack.c.l.b16 %v511
    %v551 = vunpack.c.l.b16 %v512
    %v552 = vunpack.c.l.b16 %v513
    %v553 = vunpack.c.l.b16 %v514
    %v554 = vunpack.c.l.b16 %v515
    %v555 = vunpack.c.l.b16 %v516
    %v556 = vunpack.c.l.b16 %v517
    %v557 = vunpack.c.l.b16 %v518
    %v558 = vunpack.c.l.b16 %v519
    %v559 = vunpack.c.l.b16 %v520
    %v560 = vunpack.c.l.b16 %v521
    %v561 = vunpack.c.l.b16 %v522
    %v562 = vunpack.c.l.b16 %v523
    %v563 = vunpack.c.l.b16 %v524
    %v564 = vunpack.c.l.b16 %v525
    %v565 = vunpack.c.l.b16 %v526
    %v566 = vpack.c.b16 %v551, %v550
    %v567 = vpack.c.b16 %v553, %v552
    %v568 = vpack.c.b16 %v555, %v554
    %v569 = vpack.c.b16 %v557, %v556
    %v570 = vpack.c.b16 %v559, %v558
    %v571 = vpack.c.b16 %v561, %v560
    %v572 = vpack.c.b16 %v563, %v562
    %v573 = vpack.c.b16 %v565, %v564
    %582 = vmatprep.subr.bf16.mxu0 0
    %583 = vmatpush1.bf16.msra.mxu0 %v566
    %584 = vmatprep.subr.bf16.mxu0 0
    %585 = vmatpush1.bf16.msra.mxu0 %v567
    %586 = vmatprep.subr.bf16.mxu0 0
    %587 = vmatpush1.bf16.msra.mxu0 %v568
    %588 = vmatprep.subr.bf16.mxu0 0
    %589 = vmatpush1.bf16.msra.mxu0 %v569
    %590 = vmatprep.subr.bf16.mxu0 0
    %591 = vmatpush1.bf16.msra.mxu0 %v570
    %592 = vmatprep.subr.bf16.mxu0 0
    %593 = vmatpush1.bf16.msra.mxu0 %v571
    %594 = vmatprep.subr.bf16.mxu0 0
    %595 = vmatpush1.bf16.msra.mxu0 %v572
    %596 = vmatprep.subr.bf16.mxu0 0
    %597 = vmatpush1.bf16.msra.mxu0 %v573
    %598 = vmatprep.subr.bf16.mxu0 0
    %599 = vmatpush1.bf16.msra.mxu0 0
    %600 = vmatprep.subr.bf16.mxu0 0
    %601 = vmatpush1.bf16.msra.mxu0 0
    %602 = vmatprep.subr.bf16.mxu0 0
    %603 = vmatpush1.bf16.msra.mxu0 0
    %604 = vmatprep.subr.bf16.mxu0 0
    %605 = vmatpush1.bf16.msra.mxu0 0
    %606 = vmatprep.subr.bf16.mxu0 0
    %607 = vmatpush1.bf16.msra.mxu0 0
    %608 = vmatprep.subr.bf16.mxu0 0
    %609 = vmatpush1.bf16.msra.mxu0 0
    %610 = vmatprep.subr.bf16.mxu0 0
    %611 = vmatpush1.bf16.msra.mxu0 0
    %612 = vmatprep.subr.bf16.mxu0 0
    %613 = vmatpush1.bf16.msra.mxu0 0
    %614 = vmatprep.mubr.bf16.mxu0 0
    %615 = vmatmul.mubr.bf16.gmra.mrb[0].mxu0 %v510
    %v616 = vpop.f32.mrb[0].mxu0
    %v617 = vadd.f32 %v532, %v616
    %v618 = vpop.f32.mrb[0].mxu0
    %v619 = vpop.f32.mrb[0].mxu0
    %v620 = vadd.f32 %v532, %v619
    %v621 = vpop.f32.mrb[0].mxu0
    %622 = vdwg.mxu0
    %v623 = vld [vmem:[#allocation2] sm:$0x3]
    %v624 = vrot.slane %v617, 4
    %v625 = vadd.f32 %v617, %v624
    %v626 = vrot.slane %v625, 2
    %v627 = vadd.f32 %v625, %v626
    %v628 = vrot.slane %v627, 1
    %v629 = vadd.f32 %v627, %v628
    %v630 = vrot.slane %v620, 4
    %v631 = vadd.f32 %v620, %v630
    %v632 = vrot.slane %v631, 2
    %v633 = vadd.f32 %v631, %v632
    %v634 = vrot.slane %v633, 1
    %v635 = vadd.f32 %v633, %v634
    %vm638 = vcmask 1041409
    %v639 = vsel %vm638, %v635, %v629
    %v641 = vadd.f32 %v623, %v639
    %642 = vst [vmem:[#allocation2] sm:$0x3] %v641
    // Predicated region
    $region118: #{deepset_forward.1} parent=1 // pred_check
      %p643 = pneg %p198
    $region119: #{deepset_forward.1} parent=1 // pred_check_branch
      %645 = sbr.rel (%p643) target = $region121
    $region120: #{deepset_forward.1} parent=1 // pred_region
      %v646 = vld [vmem:[#allocation2] sm:$0x3]
      %v647 = vmul.f32 %v646, 0.125
      %v648 = vpack.c.bf16 %v647, %v647
      %v649 = vld [vmem:[#allocation14] sm:$0xf]
      %v650 = vld [vmem:[#allocation14 + $0x4] sm:$0xf]
      %v651 = vld [vmem:[#allocation14 + $0x8] sm:$0xf]
      %v652 = vld [vmem:[#allocation14 + $0xc] sm:$0xf]
      %v653 = vld [vmem:[#allocation14 + $0x10] sm:$0xf]
      %v654 = vld [vmem:[#allocation14 + $0x14] sm:$0xf]
      %v655 = vld [vmem:[#allocation14 + $0x18] sm:$0xf]
      %v656 = vld [vmem:[#allocation14 + $0x1c] sm:$0xf]
      %v657 = vld [vmem:[#allocation14 + $0x20] sm:$0xf]
      %v658 = vld [vmem:[#allocation14 + $0x24] sm:$0xf]
      %v659 = vld [vmem:[#allocation14 + $0x28] sm:$0xf]
      %v660 = vld [vmem:[#allocation14 + $0x2c] sm:$0xf]
      %v661 = vld [vmem:[#allocation14 + $0x30] sm:$0xf]
      %v662 = vld [vmem:[#allocation14 + $0x34] sm:$0xf]
      %v663 = vld [vmem:[#allocation14 + $0x38] sm:$0xf]
      %v664 = vld [vmem:[#allocation14 + $0x3c] sm:$0xf]
      %v665 = vld [vmem:[#allocation16] sm:$0x1]
      %v667 = vlaneseq
      %v668 = vshrl.u32 %v667, 7
      %v669 = vsub.s32 0, %v668
      %v670 = vrot.slane %v665, %v669
      %v688 = vunpack.c.l.b16 %v649
      %v689 = vunpack.c.l.b16 %v650
      %v690 = vunpack.c.l.b16 %v651
      %v691 = vunpack.c.l.b16 %v652
      %v692 = vunpack.c.l.b16 %v653
      %v693 = vunpack.c.l.b16 %v654
      %v694 = vunpack.c.l.b16 %v655
      %v695 = vunpack.c.l.b16 %v656
      %v696 = vunpack.c.l.b16 %v657
      %v697 = vunpack.c.l.b16 %v658
      %v698 = vunpack.c.l.b16 %v659
      %v699 = vunpack.c.l.b16 %v660
      %v700 = vunpack.c.l.b16 %v661
      %v701 = vunpack.c.l.b16 %v662
      %v702 = vunpack.c.l.b16 %v663
      %v703 = vunpack.c.l.b16 %v664
      %v704 = vpack.c.b16 %v689, %v688
      %v705 = vpack.c.b16 %v691, %v690
      %v706 = vpack.c.b16 %v693, %v692
      %v707 = vpack.c.b16 %v695, %v694
      %v708 = vpack.c.b16 %v697, %v696
      %v709 = vpack.c.b16 %v699, %v698
      %v710 = vpack.c.b16 %v701, %v700
      %v711 = vpack.c.b16 %v703, %v702
      %720 = vmatprep.subr.bf16.mxu0 0
      %721 = vmatpush1.bf16.msra.mxu0 %v704
      %722 = vmatprep.subr.bf16.mxu0 0
      %723 = vmatpush1.bf16.msra.mxu0 %v705
      %724 = vmatprep.subr.bf16.mxu0 0
      %725 = vmatpush1.bf16.msra.mxu0 %v706
      %726 = vmatprep.subr.bf16.mxu0 0
      %727 = vmatpush1.bf16.msra.mxu0 %v707
      %728 = vmatprep.subr.bf16.mxu0 0
      %729 = vmatpush1.bf16.msra.mxu0 %v708
      %730 = vmatprep.subr.bf16.mxu0 0
      %731 = vmatpush1.bf16.msra.mxu0 %v709
      %732 = vmatprep.subr.bf16.mxu0 0
      %733 = vmatpush1.bf16.msra.mxu0 %v710
      %734 = vmatprep.subr.bf16.mxu0 0
      %735 = vmatpush1.bf16.msra.mxu0 %v711
      %736 = vmatprep.subr.bf16.mxu0 0
      %737 = vmatpush1.bf16.msra.mxu0 0
      %738 = vmatprep.subr.bf16.mxu0 0
      %739 = vmatpush1.bf16.msra.mxu0 0
      %740 = vmatprep.subr.bf16.mxu0 0
      %741 = vmatpush1.bf16.msra.mxu0 0
      %742 = vmatprep.subr.bf16.mxu0 0
      %743 = vmatpush1.bf16.msra.mxu0 0
      %744 = vmatprep.subr.bf16.mxu0 0
      %745 = vmatpush1.bf16.msra.mxu0 0
      %746 = vmatprep.subr.bf16.mxu0 0
      %747 = vmatpush1.bf16.msra.mxu0 0
      %748 = vmatprep.subr.bf16.mxu0 0
      %749 = vmatpush1.bf16.msra.mxu0 0
      %750 = vmatprep.subr.bf16.mxu0 0
      %751 = vmatpush1.bf16.msra.mxu0 0
      %752 = vmatprep.mubr.bf16.mxu0 0
      %753 = vmatmul.mubr.bf16.gmra.mrb[0].mxu0 %v648
      %v754 = vpop.f32.mrb[0].mxu0
      %v755 = vadd.f32 %v670, %v754
      %v756 = vpop.f32.mrb[0].mxu0
      %v757 = vpop.f32.mrb[0].mxu0
      %v758 = vpop.f32.mrb[0].mxu0
      %759 = vdwg.mxu0
      %v760 = vmax.f32 %v755, 0.0
      %v761 = vpack.c.bf16 %v760, %v760
      %v762 = vld [vmem:[%s11] sm:$0xf]
      %v763 = vld [vmem:[%s11 + $0x4] sm:$0xf]
      %v764 = vld [vmem:[%s11 + $0x8] sm:$0xf]
      %v765 = vld [vmem:[%s11 + $0xc] sm:$0xf]
      %v766 = vld [vmem:[%s11 + $0x10] sm:$0xf]
      %v767 = vld [vmem:[%s11 + $0x14] sm:$0xf]
      %v768 = vld [vmem:[%s11 + $0x18] sm:$0xf]
      %v769 = vld [vmem:[%s11 + $0x1c] sm:$0xf]
      %v770 = vld [vmem:[%s11 + $0x20] sm:$0xf]
      %v771 = vld [vmem:[%s11 + $0x24] sm:$0xf]
      %v772 = vld [vmem:[%s11 + $0x28] sm:$0xf]
      %v773 = vld [vmem:[%s11 + $0x2c] sm:$0xf]
      %v774 = vld [vmem:[%s11 + $0x30] sm:$0xf]
      %v775 = vld [vmem:[%s11 + $0x34] sm:$0xf]
      %v776 = vld [vmem:[%s11 + $0x38] sm:$0xf]
      %v777 = vld [vmem:[%s11 + $0x3c] sm:$0xf]
      %v778 = vld [vmem:[%s12] sm:$0x1]
      %v780 = vlaneseq
      %v781 = vshrl.u32 %v780, 7
      %v782 = vsub.s32 0, %v781
      %v783 = vrot.slane %v778, %v782
      %v801 = vunpack.c.l.b16 %v762
      %v802 = vunpack.c.l.b16 %v763
      %v803 = vunpack.c.l.b16 %v764
      %v804 = vunpack.c.l.b16 %v765
      %v805 = vunpack.c.l.b16 %v766
      %v806 = vunpack.c.l.b16 %v767
      %v807 = vunpack.c.l.b16 %v768
      %v808 = vunpack.c.l.b16 %v769
      %v809 = vunpack.c.l.b16 %v770
      %v810 = vunpack.c.l.b16 %v771
      %v811 = vunpack.c.l.b16 %v772
      %v812 = vunpack.c.l.b16 %v773
      %v813 = vunpack.c.l.b16 %v774
      %v814 = vunpack.c.l.b16 %v775
      %v815 = vunpack.c.l.b16 %v776
      %v816 = vunpack.c.l.b16 %v777
      %v817 = vpack.c.b16 %v802, %v801
      %v818 = vpack.c.b16 %v804, %v803
      %v819 = vpack.c.b16 %v806, %v805
      %v820 = vpack.c.b16 %v808, %v807
      %v821 = vpack.c.b16 %v810, %v809
      %v822 = vpack.c.b16 %v812, %v811
      %v823 = vpack.c.b16 %v814, %v813
      %v824 = vpack.c.b16 %v816, %v815
      %833 = vmatprep.subr.bf16.mxu0 0
      %834 = vmatpush1.bf16.msra.mxu0 %v817
      %835 = vmatprep.subr.bf16.mxu0 0
      %836 = vmatpush1.bf16.msra.mxu0 %v818
      %837 = vmatprep.subr.bf16.mxu0 0
      %838 = vmatpush1.bf16.msra.mxu0 %v819
      %839 = vmatprep.subr.bf16.mxu0 0
      %840 = vmatpush1.bf16.msra.mxu0 %v820
      %841 = vmatprep.subr.bf16.mxu0 0
      %842 = vmatpush1.bf16.msra.mxu0 %v821
      %843 = vmatprep.subr.bf16.mxu0 0
      %844 = vmatpush1.bf16.msra.mxu0 %v822
      %845 = vmatprep.subr.bf16.mxu0 0
      %846 = vmatpush1.bf16.msra.mxu0 %v823
      %847 = vmatprep.subr.bf16.mxu0 0
      %848 = vmatpush1.bf16.msra.mxu0 %v824
      %849 = vmatprep.subr.bf16.mxu0 0
      %850 = vmatpush1.bf16.msra.mxu0 0
      %851 = vmatprep.subr.bf16.mxu0 0
      %852 = vmatpush1.bf16.msra.mxu0 0
      %853 = vmatprep.subr.bf16.mxu0 0
      %854 = vmatpush1.bf16.msra.mxu0 0
      %855 = vmatprep.subr.bf16.mxu0 0
      %856 = vmatpush1.bf16.msra.mxu0 0
      %857 = vmatprep.subr.bf16.mxu0 0
      %858 = vmatpush1.bf16.msra.mxu0 0
      %859 = vmatprep.subr.bf16.mxu0 0
      %860 = vmatpush1.bf16.msra.mxu0 0
      %861 = vmatprep.subr.bf16.mxu0 0
      %862 = vmatpush1.bf16.msra.mxu0 0
      %863 = vmatprep.subr.bf16.mxu0 0
      %864 = vmatpush1.bf16.msra.mxu0 0
      %865 = vmatprep.mubr.bf16.mxu0 0
      %866 = vmatmul.mubr.bf16.gmra.mrb[0].mxu0 %v761
      %v867 = vpop.f32.mrb[0].mxu0
      %v868 = vadd.f32 %v783, %v867
      %v869 = vpop.f32.mrb[0].mxu0
      %v870 = vpop.f32.mrb[0].mxu0
      %v871 = vpop.f32.mrb[0].mxu0
      %872 = vdwg.mxu0
      %v873 = vmax.f32 %v868, 0.0
      %v874 = vpack.c.bf16 %v873, %v873
      %v875 = vld [vmem:[#allocation17] sm:$0xf]
      %v876 = vld [vmem:[#allocation17 + $0x4] sm:$0xf]
      %v877 = vld [vmem:[#allocation17 + $0x8] sm:$0xf]
      %v878 = vld [vmem:[#allocation17 + $0xc] sm:$0xf]
      %v879 = vld [vmem:[#allocation17 + $0x10] sm:$0xf]
      %v880 = vld [vmem:[#allocation17 + $0x14] sm:$0xf]
      %v881 = vld [vmem:[#allocation17 + $0x18] sm:$0xf]
      %v882 = vld [vmem:[#allocation17 + $0x1c] sm:$0xf]
      %v883 = vld [vmem:[#allocation17 + $0x20] sm:$0xf]
      %v884 = vld [vmem:[#allocation17 + $0x24] sm:$0xf]
      %v885 = vld [vmem:[#allocation17 + $0x28] sm:$0xf]
      %v886 = vld [vmem:[#allocation17 + $0x2c] sm:$0xf]
      %v887 = vld [vmem:[#allocation17 + $0x30] sm:$0xf]
      %v888 = vld [vmem:[#allocation17 + $0x34] sm:$0xf]
      %v889 = vld [vmem:[#allocation17 + $0x38] sm:$0xf]
      %v890 = vld [vmem:[#allocation17 + $0x3c] sm:$0xf]
      %v891 = vld [vmem:[%s14] sm:$0x1]
      %v893 = vlaneseq
      %v894 = vshrl.u32 %v893, 7
      %v895 = vsub.s32 0, %v894
      %v896 = vrot.slane %v891, %v895
      %v914 = vunpack.c.l.b16 %v875
      %v915 = vunpack.c.l.b16 %v876
      %v916 = vunpack.c.l.b16 %v877
      %v917 = vunpack.c.l.b16 %v878
      %v918 = vunpack.c.l.b16 %v879
      %v919 = vunpack.c.l.b16 %v880
      %v920 = vunpack.c.l.b16 %v881
      %v921 = vunpack.c.l.b16 %v882
      %v922 = vunpack.c.l.b16 %v883
      %v923 = vunpack.c.l.b16 %v884
      %v924 = vunpack.c.l.b16 %v885
      %v925 = vunpack.c.l.b16 %v886
      %v926 = vunpack.c.l.b16 %v887
      %v927 = vunpack.c.l.b16 %v888
      %v928 = vunpack.c.l.b16 %v889
      %v929 = vunpack.c.l.b16 %v890
      %v930 = vpack.c.b16 %v915, %v914
      %v931 = vpack.c.b16 %v917, %v916
      %v932 = vpack.c.b16 %v919, %v918
      %v933 = vpack.c.b16 %v921, %v920
      %v934 = vpack.c.b16 %v923, %v922
      %v935 = vpack.c.b16 %v925, %v924
      %v936 = vpack.c.b16 %v927, %v926
      %v937 = vpack.c.b16 %v929, %v928
      %946 = vmatprep.subr.bf16.mxu0 0
      %947 = vmatpush1.bf16.msra.mxu0 %v930
      %948 = vmatprep.subr.bf16.mxu0 0
      %949 = vmatpush1.bf16.msra.mxu0 %v931
      %950 = vmatprep.subr.bf16.mxu0 0
      %951 = vmatpush1.bf16.msra.mxu0 %v932
      %952 = vmatprep.subr.bf16.mxu0 0
      %953 = vmatpush1.bf16.msra.mxu0 %v933
      %954 = vmatprep.subr.bf16.mxu0 0
      %955 = vmatpush1.bf16.msra.mxu0 %v934
      %956 = vmatprep.subr.bf16.mxu0 0
      %957 = vmatpush1.bf16.msra.mxu0 %v935
      %958 = vmatprep.subr.bf16.mxu0 0
      %959 = vmatpush1.bf16.msra.mxu0 %v936
      %960 = vmatprep.subr.bf16.mxu0 0
      %961 = vmatpush1.bf16.msra.mxu0 %v937
      %962 = vmatprep.subr.bf16.mxu0 0
      %963 = vmatpush1.bf16.msra.mxu0 0
      %964 = vmatprep.subr.bf16.mxu0 0
      %965 = vmatpush1.bf16.msra.mxu0 0
      %966 = vmatprep.subr.bf16.mxu0 0
      %967 = vmatpush1.bf16.msra.mxu0 0
      %968 = vmatprep.subr.bf16.mxu0 0
      %969 = vmatpush1.bf16.msra.mxu0 0
      %970 = vmatprep.subr.bf16.mxu0 0
      %971 = vmatpush1.bf16.msra.mxu0 0
      %972 = vmatprep.subr.bf16.mxu0 0
      %973 = vmatpush1.bf16.msra.mxu0 0
      %974 = vmatprep.subr.bf16.mxu0 0
      %975 = vmatpush1.bf16.msra.mxu0 0
      %976 = vmatprep.subr.bf16.mxu0 0
      %977 = vmatpush1.bf16.msra.mxu0 0
      %978 = vmatprep.mubr.bf16.mxu0 0
      %979 = vmatmul.mubr.bf16.gmra.mrb[0].mxu0 %v874
      %v980 = vpop.f32.mrb[0].mxu0
      %v981 = vadd.f32 %v896, %v980
      %v982 = vpop.f32.mrb[0].mxu0
      %v983 = vpop.f32.mrb[0].mxu0
      %v984 = vpop.f32.mrb[0].mxu0
      %985 = vdwg.mxu0
      %v986 = vmax.f32 %v981, 0.0
      %v987 = vpack.c.bf16 %v986, %v986
      %v988 = vld [vmem:[#allocation19] sm:$0xf]
      %v989 = vld [vmem:[#allocation19 + $0x4] sm:$0xf]
      %v990 = vld [vmem:[#allocation19 + $0x8] sm:$0xf]
      %v991 = vld [vmem:[#allocation19 + $0xc] sm:$0xf]
      %v992 = vld [vmem:[#allocation19 + $0x10] sm:$0xf]
      %v993 = vld [vmem:[#allocation19 + $0x14] sm:$0xf]
      %v994 = vld [vmem:[#allocation19 + $0x18] sm:$0xf]
      %v995 = vld [vmem:[#allocation19 + $0x1c] sm:$0xf]
      %v996 = vld [vmem:[#allocation19 + $0x20] sm:$0xf]
      %v997 = vld [vmem:[#allocation19 + $0x24] sm:$0xf]
      %v998 = vld [vmem:[#allocation19 + $0x28] sm:$0xf]
      %v999 = vld [vmem:[#allocation19 + $0x2c] sm:$0xf]
      %v1000 = vld [vmem:[#allocation19 + $0x30] sm:$0xf]
      %v1001 = vld [vmem:[#allocation19 + $0x34] sm:$0xf]
      %v1002 = vld [vmem:[#allocation19 + $0x38] sm:$0xf]
      %v1003 = vld [vmem:[#allocation19 + $0x3c] sm:$0xf]
      %v1004 = vld [vmem:[%s16] sm:$0x1]
      %v1006 = vlaneseq
      %v1007 = vshrl.u32 %v1006, 7
      %v1008 = vsub.s32 0, %v1007
      %v1009 = vrot.slane %v1004, %v1008
      %v1027 = vunpack.c.l.b16 %v988
      %v1028 = vunpack.c.l.b16 %v989
      %v1029 = vunpack.c.l.b16 %v990
      %v1030 = vunpack.c.l.b16 %v991
      %v1031 = vunpack.c.l.b16 %v992
      %v1032 = vunpack.c.l.b16 %v993
      %v1033 = vunpack.c.l.b16 %v994
      %v1034 = vunpack.c.l.b16 %v995
      %v1035 = vunpack.c.l.b16 %v996
      %v1036 = vunpack.c.l.b16 %v997
      %v1037 = vunpack.c.l.b16 %v998
      %v1038 = vunpack.c.l.b16 %v999
      %v1039 = vunpack.c.l.b16 %v1000
      %v1040 = vunpack.c.l.b16 %v1001
      %v1041 = vunpack.c.l.b16 %v1002
      %v1042 = vunpack.c.l.b16 %v1003
      %v1043 = vpack.c.b16 %v1028, %v1027
      %v1044 = vpack.c.b16 %v1030, %v1029
      %v1045 = vpack.c.b16 %v1032, %v1031
      %v1046 = vpack.c.b16 %v1034, %v1033
      %v1047 = vpack.c.b16 %v1036, %v1035
      %v1048 = vpack.c.b16 %v1038, %v1037
      %v1049 = vpack.c.b16 %v1040, %v1039
      %v1050 = vpack.c.b16 %v1042, %v1041
      %1059 = vmatprep.subr.bf16.mxu0 0
      %1060 = vmatpush1.bf16.msra.mxu0 %v1043
      %1061 = vmatprep.subr.bf16.mxu0 0
      %1062 = vmatpush1.bf16.msra.mxu0 %v1044
      %1063 = vmatprep.subr.bf16.mxu0 0
      %1064 = vmatpush1.bf16.msra.mxu0 %v1045
      %1065 = vmatprep.subr.bf16.mxu0 0
      %1066 = vmatpush1.bf16.msra.mxu0 %v1046
      %1067 = vmatprep.subr.bf16.mxu0 0
      %1068 = vmatpush1.bf16.msra.mxu0 %v1047
      %1069 = vmatprep.subr.bf16.mxu0 0
      %1070 = vmatpush1.bf16.msra.mxu0 %v1048
      %1071 = vmatprep.subr.bf16.mxu0 0
      %1072 = vmatpush1.bf16.msra.mxu0 %v1049
      %1073 = vmatprep.subr.bf16.mxu0 0
      %1074 = vmatpush1.bf16.msra.mxu0 %v1050
      %1075 = vmatprep.subr.bf16.mxu0 0
      %1076 = vmatpush1.bf16.msra.mxu0 0
      %1077 = vmatprep.subr.bf16.mxu0 0
      %1078 = vmatpush1.bf16.msra.mxu0 0
      %1079 = vmatprep.subr.bf16.mxu0 0
      %1080 = vmatpush1.bf16.msra.mxu0 0
      %1081 = vmatprep.subr.bf16.mxu0 0
      %1082 = vmatpush1.bf16.msra.mxu0 0
      %1083 = vmatprep.subr.bf16.mxu0 0
      %1084 = vmatpush1.bf16.msra.mxu0 0
      %1085 = vmatprep.subr.bf16.mxu0 0
      %1086 = vmatpush1.bf16.msra.mxu0 0
      %1087 = vmatprep.subr.bf16.mxu0 0
      %1088 = vmatpush1.bf16.msra.mxu0 0
      %1089 = vmatprep.subr.bf16.mxu0 0
      %1090 = vmatpush1.bf16.msra.mxu0 0
      %1091 = vmatprep.mubr.bf16.mxu0 0
      %1092 = vmatmul.mubr.bf16.gmra.mrb[0].mxu0 %v987
      %v1093 = vpop.f32.mrb[0].mxu0
      %v1094 = vadd.f32 %v1009, %v1093
      %v1095 = vpop.f32.mrb[0].mxu0
      %v1096 = vpop.f32.mrb[0].mxu0
      %v1097 = vpop.f32.mrb[0].mxu0
      %1098 = vdwg.mxu0
      %1099 = vst [vmem:[%s17] sm:$0x3] %v1094
    $region121: #{deepset_forward.1} parent=1 // pred_fallthru
      _
    // Predicated region
    $region122: #{deepset_forward.1} parent=1 // pred_check
      _
    $region123: #{deepset_forward.1} parent=1 // pred_check_branch
      %1101 = sbr.rel (0) target = $region125
    $region124: #{deepset_forward.1} parent=1 // pred_region
      _
    $region125: #{deepset_forward.1} parent=1 // pred_fallthru
      _
    // Predicated region
    $region126: #{deepset_forward.1} parent=1 // pred_check
      _
    $region127: #{deepset_forward.1} parent=1 // pred_check_branch
      %1103 = sbr.rel (0) target = $region129
    $region128: #{deepset_forward.1} parent=1 // pred_region
      _
    $region129: #{deepset_forward.1} parent=1 // pred_fallthru
      _
    %1104 = vsyncpa [#allocation4], 1
    %1105 = vsyncpa [#allocation6], 1
    %1106 = vsyncpa [#allocation9], 1
    %1107 = vsyncpa [#allocation12], 1
    %1108 = vsyncpa [#allocation15], 1
    %1109 = vsyncpa [#allocation18], 1

</llo_original>
